<compile_context>
chip_gen: v6e
topology: v6e:2x2x1
jax: 0.10.0
libtpu: 0.0.40
codegen_flags: <defaults>
</compile_context>

<pallas_src>
import jax
import jax.numpy as jnp
from jax.experimental import pallas as pl
from jax.experimental.pallas import tpu as pltpu

INPUT_DIM = 8 * 4   # 32
HIDDEN1 = 64
HIDDEN2 = 32
OUTPUT_DIM = 1

# Row tile (batch columns per grid step).  With the lane-dense bf16 x tile the
# per-step footprint is ~ 1 MiB (x, double-buffered 2 MiB) + ~10 MiB of f32/bf16
# intermediates -> fits every generation's scoped-VMEM budget while amortizing
# the ~0.35 us/step grid overhead.  (v6e/v7x can go to 32768; v5e keep <=16384.)
DEFAULT_BLOCK_ROWS = 16384


def _cdiv(a, b):
    return -(-a // b)


def _round_up(n, m):
    return ((n + m - 1) // m) * m


def _mlp_kernel(x_ref, w1_ref, b1_ref, w2_ref, b2_ref, w3_ref, b3_ref, o_ref):
    x = x_ref[...]                                        # (32, TB) bf16, lane-dense

    # fc1: (64, 32) @ (32, TB) -> (64, TB).  bf16 inputs, f32 accumulation, no relayout.
    h1 = jnp.dot(w1_ref[...], x, preferred_element_type=jnp.float32)
    h1 = jnp.maximum(h1 + b1_ref[...], 0.0)               # f32 bias+ReLU (v5e-safe)

    # fc2: (32, 64) @ (64, TB) -> (32, TB).  Re-cast h1 to bf16 for the MXU,
    # keep the f32 accumulator.
    h2 = jnp.dot(w2_ref[...], h1.astype(jnp.bfloat16),
                 preferred_element_type=jnp.float32)
    h2 = jnp.maximum(h2 + b2_ref[...], 0.0)               # (32, TB) f32

    # fc3 (K=32, N=1): keep it off the MXU — VPU broadcast-mul + cross-sublane sum.
    o = jnp.sum(h2 * w3_ref[...], axis=0, keepdims=True) + b3_ref[...]   # (1, TB) f32
    o_ref[...] = o.astype(o_ref.dtype)                    # lane-dense store


def _replicated(shape):
    """Full-array block, same block every grid step (weights/biases stay resident)."""
    return pl.BlockSpec(shape, lambda i: (0,) * len(shape))


def _choose_tile(B, block_rows):
    """Tile size = round_up(cdiv(B, n_tiles), 128); <128 rows of padding per tile,
    and at least 2 grid steps whenever the batch allows (feeds both v7x TCs)."""
    n_tiles = max(_cdiv(B, block_rows), 1)
    if n_tiles == 1 and B > 128:
        n_tiles = 2
    TB = _round_up(_cdiv(B, n_tiles), 128)
    B_pad = _round_up(B, TB)
    return TB, B_pad


def simple_nn_forward(x, params, *, block_rows=DEFAULT_BLOCK_ROWS):
    """x: (..., 8, 4) float32 (anything that .view(-1, 32)'s) -> (B, 1) float32."""
    w1, b1, w2, b2, w3c, b3 = params
    x2d = x.reshape(-1, INPUT_DIM)            # torch .view(-1, 8*4)
    B = x2d.shape[0]

    TB, B_pad = _choose_tile(B, block_rows)
    grid = (B_pad // TB,)

    # Feature-major, lane-dense, bf16 input slab.  cast + transpose + (small) pad
    # is a single layout pass under jit — the kernel then DMAs half the bytes of
    # the f32 original and needs no in-kernel relayout.
    xT = x2d.astype(jnp.bfloat16).T           # (32, B)
    if B_pad != B:
        xT = jnp.pad(xT, ((0, 0), (0, B_pad - B)))

    w1b = w1.astype(jnp.bfloat16)             # (64, 32)
    w2b = w2.astype(jnp.bfloat16)             # (32, 64)

    flops = 2 * B_pad * (INPUT_DIM * HIDDEN1 + HIDDEN1 * HIDDEN2 + HIDDEN2 * OUTPUT_DIM)
    weight_bytes = (2 * (INPUT_DIM * HIDDEN1 + HIDDEN1 * HIDDEN2)      # bf16 w1, w2
                    + 4 * (HIDDEN1 + HIDDEN2 + HIDDEN2 * OUTPUT_DIM + OUTPUT_DIM))
    bytes_accessed = B_pad * INPUT_DIM * 2 + B_pad * OUTPUT_DIM * 4 + weight_bytes

    out_flat = pl.pallas_call(
        _mlp_kernel,
        out_shape=jax.ShapeDtypeStruct((1, B_pad), jnp.float32),
        grid=grid,
        in_specs=[
            pl.BlockSpec((INPUT_DIM, TB), lambda i: (0, i)),   # x tile, pipelined over batch
            _replicated((HIDDEN1, INPUT_DIM)),                 # fc1.weight (64, 32) bf16
            _replicated((HIDDEN1, 1)),                         # fc1.bias   (64, 1)  f32
            _replicated((HIDDEN2, HIDDEN1)),                   # fc2.weight (32, 64) bf16
            _replicated((HIDDEN2, 1)),                         # fc2.bias   (32, 1)  f32
            _replicated((HIDDEN2, OUTPUT_DIM)),                # fc3.weight^T (32, 1) f32
            _replicated((OUTPUT_DIM, OUTPUT_DIM)),             # fc3.bias   (1, 1)   f32
        ],
        out_specs=pl.BlockSpec((1, TB), lambda i: (0, i)),     # lane-dense output slab
        compiler_params=pltpu.CompilerParams(
            dimension_semantics=("parallel",),                 # batch axis across TCs (v7x)
            vmem_limit_bytes=32 << 20),                        # explicit, safe on v5e/v6e/v7x
        cost_estimate=pl.CostEstimate(
            flops=flops, transcendentals=0, bytes_accessed=bytes_accessed),
    )(xT, w1b, b1, w2b, b2, w3c, b3)

    return out_flat[0, :B].reshape(B, OUTPUT_DIM)


def init_params(key):
    """Deterministic init mimicking PyTorch's default nn.Linear init
    (uniform(-1/sqrt(fan_in), 1/sqrt(fan_in)) for weight and bias).
    Weights stored (out, in) like PyTorch; biases stored as (out, 1) columns;
    fc3's weight stored as a (32, 1) column.  All parameters kept in f32."""
    def linear(key, fan_in, fan_out):
        kw, kb = jax.random.split(key)
        bound = 1.0 / jnp.sqrt(jnp.float32(fan_in))
        w = jax.random.uniform(kw, (fan_out, fan_in), jnp.float32, -bound, bound)
        b = jax.random.uniform(kb, (fan_out, 1), jnp.float32, -bound, bound)
        return w, b

    k1, k2, k3 = jax.random.split(key, 3)
    w1, b1 = linear(k1, INPUT_DIM, HIDDEN1)     # (64, 32), (64, 1)
    w2, b2 = linear(k2, HIDDEN1, HIDDEN2)       # (32, 64), (32, 1)
    w3, b3 = linear(k3, HIDDEN2, OUTPUT_DIM)    # (1, 32),  (1, 1)
    return (w1, b1, w2, b2, w3.T, b3)


def reference_forward(x, params):
    """Pure-JAX f32 reference for a sanity check."""
    w1, b1, w2, b2, w3c, b3 = params
    h = x.reshape(-1, INPUT_DIM)
    h = jnp.maximum(h @ w1.T + b1[:, 0], 0.0)
    h = jnp.maximum(h @ w2.T + b2[:, 0], 0.0)
    return h @ w3c + b3[:, 0]


if __name__ == "__main__":
    key = jax.random.PRNGKey(0)
    k_params, k_x = jax.random.split(key)

    params = init_params(k_params)
    # Small batch; input shaped (B, 8, 4) so .view(-1, 32) semantics apply.
    x = jax.random.normal(k_x, (8, 8, 4), dtype=jnp.float32)

    fwd = jax.jit(lambda xx: simple_nn_forward(xx, params))
    out = jax.block_until_ready(fwd(x))

    ref = reference_forward(x, params)
    assert out.shape == (8, 1), out.shape
    # bf16 MXU inputs with f32 accumulation -> ~1e-3 relative deviation vs f32 reference.
    assert jnp.allclose(out, ref, atol=2e-2, rtol=2e-2), "mismatch vs reference"

    print("KERNEL_OK")
</pallas_src>

<mosaic_0001>
module attributes {stable_mosaic.version = 11 : i64} {
  func.func @_mlp_kernel(%arg0: i32, %arg1: memref<32x128xbf16, #tpu.memory_space<vmem>>, %arg2: memref<64x32xbf16, #tpu.memory_space<vmem>>, %arg3: memref<64x1xf32, #tpu.memory_space<vmem>>, %arg4: memref<32x64xbf16, #tpu.memory_space<vmem>>, %arg5: memref<32x1xf32, #tpu.memory_space<vmem>>, %arg6: memref<32x1xf32, #tpu.memory_space<vmem>>, %arg7: memref<1x1xf32, #tpu.memory_space<vmem>>, %arg8: memref<1x128xf32, #tpu.memory_space<vmem>>) attributes {dimension_semantics = [#tpu.dimension_semantics<parallel>], iteration_bounds = array<i64: 1>, scalar_prefetch = 0 : i64, scratch_operands = 0 : i64, tpu.core_type = #tpu.core_type<tc>, window_params = [{transform_indices = @transform_0, window_bounds = array<i64: 32, 128>}, {pipeline_mode = #tpu.pipeline_mode<synchronous>, transform_indices = @transform_1, window_bounds = array<i64: 64, 32>}, {pipeline_mode = #tpu.pipeline_mode<synchronous>, transform_indices = @transform_2, window_bounds = array<i64: 64, 1>}, {pipeline_mode = #tpu.pipeline_mode<synchronous>, transform_indices = @transform_3, window_bounds = array<i64: 32, 64>}, {pipeline_mode = #tpu.pipeline_mode<synchronous>, transform_indices = @transform_4, window_bounds = array<i64: 32, 1>}, {pipeline_mode = #tpu.pipeline_mode<synchronous>, transform_indices = @transform_5, window_bounds = array<i64: 32, 1>}, {pipeline_mode = #tpu.pipeline_mode<synchronous>, transform_indices = @transform_6, window_bounds = array<i64: 1, 1>}, {transform_indices = @transform_7, window_bounds = array<i64: 1, 128>}]} {
    %c0 = arith.constant 0 : index
    %c0_0 = arith.constant 0 : index
    %0 = vector.load %arg1[%c0, %c0_0] : memref<32x128xbf16, #tpu.memory_space<vmem>>, vector<32x128xbf16>
    %c0_1 = arith.constant 0 : index
    %c0_2 = arith.constant 0 : index
    %1 = vector.load %arg2[%c0_1, %c0_2] : memref<64x32xbf16, #tpu.memory_space<vmem>>, vector<64x32xbf16>
    %cst = arith.constant dense<0.000000e+00> : vector<64x128xf32>
    %2 = tpu.matmul %1, %0, %cst {dimension_numbers = #tpu.dot_dimension_numbers<[1], [0], [0], [1], [0, 0, 1, 1], [], []>} : vector<64x32xbf16>, vector<32x128xbf16>, vector<64x128xf32> -> vector<64x128xf32>
    %c0_3 = arith.constant 0 : index
    %c0_4 = arith.constant 0 : index
    %3 = vector.load %arg3[%c0_3, %c0_4] : memref<64x1xf32, #tpu.memory_space<vmem>>, vector<64x1xf32>
    %4 = vector.broadcast %3 : vector<64x1xf32> to vector<64x128xf32>
    %5 = arith.addf %2, %4 : vector<64x128xf32>
    %cst_5 = arith.constant 0.000000e+00 : f32
    %6 = vector.broadcast %cst_5 : f32 to vector<64x128xf32>
    %7 = arith.maximumf %5, %6 : vector<64x128xf32>
    %c0_6 = arith.constant 0 : index
    %c0_7 = arith.constant 0 : index
    %8 = vector.load %arg4[%c0_6, %c0_7] : memref<32x64xbf16, #tpu.memory_space<vmem>>, vector<32x64xbf16>
    %9 = arith.truncf %7 : vector<64x128xf32> to vector<64x128xbf16>
    %cst_8 = arith.constant dense<0.000000e+00> : vector<32x128xf32>
    %10 = tpu.matmul %8, %9, %cst_8 {dimension_numbers = #tpu.dot_dimension_numbers<[1], [0], [0], [1], [0, 0, 1, 1], [], []>} : vector<32x64xbf16>, vector<64x128xbf16>, vector<32x128xf32> -> vector<32x128xf32>
    %c0_9 = arith.constant 0 : index
    %c0_10 = arith.constant 0 : index
    %11 = vector.load %arg5[%c0_9, %c0_10] : memref<32x1xf32, #tpu.memory_space<vmem>>, vector<32x1xf32>
    %12 = vector.broadcast %11 : vector<32x1xf32> to vector<32x128xf32>
    %13 = arith.addf %10, %12 : vector<32x128xf32>
    %cst_11 = arith.constant 0.000000e+00 : f32
    %14 = vector.broadcast %cst_11 : f32 to vector<32x128xf32>
    %15 = arith.maximumf %13, %14 : vector<32x128xf32>
    %c0_12 = arith.constant 0 : index
    %c0_13 = arith.constant 0 : index
    %16 = vector.load %arg6[%c0_12, %c0_13] : memref<32x1xf32, #tpu.memory_space<vmem>>, vector<32x1xf32>
    %17 = vector.broadcast %16 : vector<32x1xf32> to vector<32x128xf32>
    %18 = arith.mulf %15, %17 : vector<32x128xf32>
    %cst_14 = arith.constant dense<0.000000e+00> : vector<128xf32>
    %19 = vector.multi_reduction <add>, %18, %cst_14 [0] : vector<32x128xf32> to vector<128xf32>
    %20 = vector.shape_cast %19 : vector<128xf32> to vector<1x128xf32>
    %c0_15 = arith.constant 0 : index
    %c0_16 = arith.constant 0 : index
    %21 = vector.load %arg7[%c0_15, %c0_16] : memref<1x1xf32, #tpu.memory_space<vmem>>, vector<1x1xf32>
    %22 = vector.broadcast %21 : vector<1x1xf32> to vector<1x128xf32>
    %23 = arith.addf %20, %22 : vector<1x128xf32>
    %c0_17 = arith.constant 0 : index
    %c0_18 = arith.constant 0 : index
    %24 = vector.load %arg8[%c0_17, %c0_18] : memref<1x128xf32, #tpu.memory_space<vmem>>, vector<1x128xf32>
    tpu.vector_store %arg8[%c0_17, %c0_18], %23 {strides = array<i32>} : memref<1x128xf32, #tpu.memory_space<vmem>>, vector<1x128xf32>,
    return
  }
  func.func @transform_0(%arg0: i32) -> (i32, i32) {
    %c0_i32 = arith.constant 0 : i32
    %c0_i32_0 = arith.constant 0 : i32
    return %c0_i32, %arg0 : i32, i32
  }
  func.func @transform_1(%arg0: i32) -> (i32, i32) {
    %c0_i32 = arith.constant 0 : i32
    %c0_i32_0 = arith.constant 0 : i32
    %c0_i32_1 = arith.constant 0 : i32
    return %c0_i32, %c0_i32_0 : i32, i32
  }
  func.func @transform_2(%arg0: i32) -> (i32, i32) {
    %c0_i32 = arith.constant 0 : i32
    %c0_i32_0 = arith.constant 0 : i32
    %c0_i32_1 = arith.constant 0 : i32
    return %c0_i32, %c0_i32_0 : i32, i32
  }
  func.func @transform_3(%arg0: i32) -> (i32, i32) {
    %c0_i32 = arith.constant 0 : i32
    %c0_i32_0 = arith.constant 0 : i32
    %c0_i32_1 = arith.constant 0 : i32
    return %c0_i32, %c0_i32_0 : i32, i32
  }
  func.func @transform_4(%arg0: i32) -> (i32, i32) {
    %c0_i32 = arith.constant 0 : i32
    %c0_i32_0 = arith.constant 0 : i32
    %c0_i32_1 = arith.constant 0 : i32
    return %c0_i32, %c0_i32_0 : i32, i32
  }
  func.func @transform_5(%arg0: i32) -> (i32, i32) {
    %c0_i32 = arith.constant 0 : i32
    %c0_i32_0 = arith.constant 0 : i32
    %c0_i32_1 = arith.constant 0 : i32
    return %c0_i32, %c0_i32_0 : i32, i32
  }
  func.func @transform_6(%arg0: i32) -> (i32, i32) {
    %c0_i32 = arith.constant 0 : i32
    %c0_i32_0 = arith.constant 0 : i32
    %c0_i32_1 = arith.constant 0 : i32
    return %c0_i32, %c0_i32_0 : i32, i32
  }
  func.func @transform_7(%arg0: i32) -> (i32, i32) {
    %c0_i32 = arith.constant 0 : i32
    %c0_i32_0 = arith.constant 0 : i32
    return %c0_i32, %arg0 : i32, i32
  }
}

</mosaic_0001>

<llo_original>
// kernel: _lambda_.1
$region0: #{_lambda_.1}
  #allocation0 [shape = 'u32[]', space=smem, size = 0x4, offset = 0x4, fixed_abs, tag = 'smem constant byte address 0x4 - core index']
  #allocation1 [shape = 'u32[144,128]{1,0:T(1,128)}', space=vmem, size = 0x12000, scoped, tag = 'internal scratch']
  #allocation2 [shape = 'f32[1,1]{1,0:T(1,128)S(1)}', space=vmem, size = 0x200, scoped, tag = 'scoped memory for _lambda_.1']
  %s0 = inlined_call_operand.vmem [shape: bf16[32,128], index: 0, kind: input, shape index: {}]
  %s1 = inlined_call_operand.hbm [shape: bf16[64,32], index: 1, kind: input, shape index: {}]
  %s2 = inlined_call_operand.vmem [shape: f32[64,1], index: 2, kind: input, shape index: {}]
  %s3 = inlined_call_operand.vmem [shape: bf16[32,64], index: 3, kind: input, shape index: {}]
  %s4 = inlined_call_operand.hbm [shape: f32[32,1], index: 4, kind: input, shape index: {}]
  %s5 = inlined_call_operand.vmem [shape: f32[32,1], index: 5, kind: input, shape index: {}]
  %s6 = inlined_call_operand.<no memory space> [shape: f32[1,1], index: 6, kind: input, shape index: {}]
  %s7 = inlined_call_operand.vmem [shape: f32[1,128], index: 7, kind: output, shape index: {}]
  %s8 = sld [smem:[#allocation0]]
  $region46: #{_lambda_.1} parent=0
    _
  %s10 = ssub.s32 1, %s8
  %s11 = scalar_select 0, %s10, %s8
  %v12 = vstv %s6
  %13 = vst [vmem:[#allocation2] sm:$0x1] %v12
  $region1: #{_lambda_.1} parent=0
    #allocation3 [shape = 'u8[16384]{0}', space=vmem, size = 0x4000, scoped, tag = 'input window, operand 1, single buffered']
    #allocation4 [shape = 's32[1]{0}', space=sflag, size = 0x4, scoped, tag = 'scoped memory for _lambda_.1']
    #allocation5 [shape = 'u8[16384]{0}', space=vmem, size = 0x4000, scoped, tag = 'input window, operand 4, single buffered']
    #allocation6 [shape = 's32[1]{0}', space=sflag, size = 0x4, scoped, tag = 'scoped memory for _lambda_.1']
    %14 = vsyncpa [#allocation4], 0
    %15 = vsyncpa [#allocation6], 0
    // Predicated region
    $region2: #{_lambda_.1} parent=1 // pred_check
      _
    $region3: #{_lambda_.1} parent=1 // pred_check_branch
      %17 = sbr.rel (0) target = $region5
    $region4: #{_lambda_.1} parent=1 // pred_region
      _
    $region5: #{_lambda_.1} parent=1 // pred_fallthru
      _
    // Predicated region
    $region6: #{_lambda_.1} parent=1 // pred_check
      _
    $region7: #{_lambda_.1} parent=1 // pred_check_branch
      %19 = sbr.rel (0) target = $region9
    $region8: #{_lambda_.1} parent=1 // pred_region
      %s21 = ssub.s32 512, 512
      %22 = vsyncadd [#allocation4], %s21
      %s23 = sshll.u32 [#allocation3], 4
      %s24 = int_to_ptr.vmem [resolvable:$true] %s23
      %29 = dma.hbm_to_vmem [thread:$0]  %s1, 512, %s24, [#allocation4], 64, 64, 4
    $region9: #{_lambda_.1} parent=1 // pred_fallthru
      _
    // Predicated region
    $region10: #{_lambda_.1} parent=1 // pred_check
      _
    $region11: #{_lambda_.1} parent=1 // pred_check_branch
      %31 = sbr.rel (0) target = $region13
    $region12: #{_lambda_.1} parent=1 // pred_region
      _
    $region13: #{_lambda_.1} parent=1 // pred_fallthru
      _
    // Predicated region
    $region14: #{_lambda_.1} parent=1 // pred_check
      _
    $region15: #{_lambda_.1} parent=1 // pred_check_branch
      %33 = sbr.rel (0) target = $region17
    $region16: #{_lambda_.1} parent=1 // pred_region
      _
    $region17: #{_lambda_.1} parent=1 // pred_fallthru
      _
    // Predicated region
    $region18: #{_lambda_.1} parent=1 // pred_check
      _
    $region19: #{_lambda_.1} parent=1 // pred_check_branch
      %35 = sbr.rel (0) target = $region21
    $region20: #{_lambda_.1} parent=1 // pred_region
      %s37 = ssub.s32 512, 512
      %38 = vsyncadd [#allocation6], %s37
      %s39 = sshll.u32 [#allocation5], 4
      %s40 = int_to_ptr.vmem [resolvable:$true] %s39
      %45 = dma.hbm_to_vmem [thread:$0]  %s4, 512, %s40, [#allocation6], 128, 128, 8
    $region21: #{_lambda_.1} parent=1 // pred_fallthru
      _
    // Predicated region
    $region22: #{_lambda_.1} parent=1 // pred_check
      _
    $region23: #{_lambda_.1} parent=1 // pred_check_branch
      %47 = sbr.rel (0) target = $region25
    $region24: #{_lambda_.1} parent=1 // pred_region
      _
    $region25: #{_lambda_.1} parent=1 // pred_fallthru
      _
    // Predicated region
    $region26: #{_lambda_.1} parent=1 // pred_check
      _
    $region27: #{_lambda_.1} parent=1 // pred_check_branch
      %49 = sbr.rel (0) target = $region29
    $region28: #{_lambda_.1} parent=1 // pred_region
      _
    $region29: #{_lambda_.1} parent=1 // pred_fallthru
      _
    // Predicated region
    $region30: #{_lambda_.1} parent=1 // pred_check
      _
    $region31: #{_lambda_.1} parent=1 // pred_check_branch
      %51 = sbr.rel (0) target = $region33
    $region32: #{_lambda_.1} parent=1 // pred_region
      %52 = dma.done [#allocation4], 512
    $region33: #{_lambda_.1} parent=1 // pred_fallthru
      _
    // Predicated region
    $region34: #{_lambda_.1} parent=1 // pred_check
      _
    $region35: #{_lambda_.1} parent=1 // pred_check_branch
      %54 = sbr.rel (0) target = $region37
    $region36: #{_lambda_.1} parent=1 // pred_region
      %55 = dma.done [#allocation6], 512
    $region37: #{_lambda_.1} parent=1 // pred_fallthru
      _
    %v57 = vld [vmem:[%s0] sm:$0xf]
    %v58 = vld [vmem:[%s0 + $0x4] sm:$0xf]
    %v59 = vld [vmem:[%s0 + $0x8] sm:$0xf]
    %v60 = vld [vmem:[%s0 + $0xc] sm:$0xf]
    %v61 = vld [vmem:[#allocation3] sm:$0xf]
    %v62 = vld [vmem:[#allocation3 + $0x4] sm:$0xf]
    %v63 = vld [vmem:[#allocation3 + $0x8] sm:$0xf]
    %v64 = vld [vmem:[#allocation3 + $0xc] sm:$0xf]
    %v65 = vld [vmem:[#allocation3 + $0x10] sm:$0xf]
    %v66 = vld [vmem:[#allocation3 + $0x14] sm:$0xf]
    %v67 = vld [vmem:[#allocation3 + $0x18] sm:$0xf]
    %v68 = vld [vmem:[#allocation3 + $0x1c] sm:$0xf]
    %v69 = vld [vmem:[%s2] sm:$0xff]
    %v70 = vld [vmem:[%s2 + $0x8] sm:$0xff]
    %v71 = vld [vmem:[%s2 + $0x10] sm:$0xff]
    %v72 = vld [vmem:[%s2 + $0x18] sm:$0xff]
    %v73 = vld [vmem:[%s2 + $0x20] sm:$0xff]
    %v74 = vld [vmem:[%s2 + $0x28] sm:$0xff]
    %v75 = vld [vmem:[%s2 + $0x30] sm:$0xff]
    %v76 = vld [vmem:[%s2 + $0x38] sm:$0xff]
    %78 = vset.pattern.permute.xlu0 0
    %79 = vperm.xlu0 %78, %v69
    %v80 = vpop.permute.xlu0 %79
    %83 = vset.pattern.permute.xlu0 0
    %84 = vperm.xlu0 %83, %v70
    %v85 = vpop.permute.xlu0 %84
    %88 = vset.pattern.permute.xlu0 0
    %89 = vperm.xlu0 %88, %v71
    %v90 = vpop.permute.xlu0 %89
    %93 = vset.pattern.permute.xlu0 0
    %94 = vperm.xlu0 %93, %v72
    %v95 = vpop.permute.xlu0 %94
    %98 = vset.pattern.permute.xlu0 0
    %99 = vperm.xlu0 %98, %v73
    %v100 = vpop.permute.xlu0 %99
    %103 = vset.pattern.permute.xlu0 0
    %104 = vperm.xlu0 %103, %v74
    %v105 = vpop.permute.xlu0 %104
    %108 = vset.pattern.permute.xlu0 0
    %109 = vperm.xlu0 %108, %v75
    %v110 = vpop.permute.xlu0 %109
    %113 = vset.pattern.permute.xlu0 0
    %114 = vperm.xlu0 %113, %v76
    %v115 = vpop.permute.xlu0 %114
    %v125 = vunpack.c.l.b16 %v61
    %v126 = vunpack.c.l.b16 %v62
    %v127 = vunpack.c.l.b16 %v63
    %v128 = vunpack.c.l.b16 %v64
    %v129 = vunpack.c.l.b16 %v65
    %v130 = vunpack.c.l.b16 %v66
    %v131 = vunpack.c.l.b16 %v67
    %v132 = vunpack.c.l.b16 %v68
    %v133 = vpack.c.b16 %v126, %v125
    %v134 = vpack.c.b16 %v128, %v127
    %v135 = vpack.c.b16 %v130, %v129
    %v136 = vpack.c.b16 %v132, %v131
    %v141 = vunpack.c.l.b16 %v57
    %v142 = vunpack.c.l.b16 %v58
    %v143 = vunpack.c.l.b16 %v59
    %v144 = vunpack.c.l.b16 %v60
    %v145 = vpack.c.b16 %v142, %v141
    %v146 = vpack.c.b16 %v144, %v143
    %vm149 = vcmask 261120
    %v151 = vsel %vm149, %v133, 0
    %v154 = vsel %vm149, %v134, 0
    %v157 = vsel %vm149, %v135, 0
    %v160 = vsel %vm149, %v136, 0
    %162 = vmatprep.subr.bf16.mxu0 0
    %163 = vmatpush1.bf16.msra.mxu0 0
    %164 = vmatprep.subr.bf16.mxu0 0
    %165 = vmatpush1.bf16.msra.mxu0 0
    %166 = vmatprep.subr.bf16.mxu0 0
    %167 = vmatpush1.bf16.msra.mxu0 0
    %168 = vmatprep.subr.bf16.mxu0 0
    %169 = vmatpush1.bf16.msra.mxu0 0
    %170 = vmatprep.subr.bf16.mxu0 0
    %171 = vmatpush1.bf16.msra.mxu0 0
    %172 = vmatprep.subr.bf16.mxu0 0
    %173 = vmatpush1.bf16.msra.mxu0 0
    %174 = vmatprep.subr.bf16.mxu0 0
    %175 = vmatpush1.bf16.msra.mxu0 %v146
    %176 = vmatprep.subr.bf16.mxu0 0
    %177 = vmatpush1.bf16.msra.mxu0 %v145
    %178 = vmatprep.subr.bf16.mxu0 0
    %179 = vmatpush2.bf16.msra.mxu0 0
    %180 = vmatprep.subr.bf16.mxu0 0
    %181 = vmatpush2.bf16.msra.mxu0 0
    %182 = vmatprep.subr.bf16.mxu0 0
    %183 = vmatpush2.bf16.msra.mxu0 0
    %184 = vmatprep.subr.bf16.mxu0 0
    %185 = vmatpush2.bf16.msra.mxu0 0
    %186 = vmatprep.subr.bf16.mxu0 0
    %187 = vmatpush2.bf16.msra.mxu0 0
    %188 = vmatprep.subr.bf16.mxu0 0
    %189 = vmatpush2.bf16.msra.mxu0 0
    %190 = vmatprep.subr.bf16.mxu0 0
    %191 = vmatpush2.bf16.msra.mxu0 0
    %192 = vmatprep.subr.bf16.mxu0 0
    %193 = vmatpush2.bf16.msra.mxu0 0
    %194 = vmatprep.mubr.bf16.mxu0 0
    %195 = vmatmul.mubr.bf16.gmra.mxu0 %v151
    %v196 = vpop.f32.mrf.mxu0
    %v197 = vadd.f32 %v80, %v196
    %v198 = vpop.f32.mrf.mxu0
    %v199 = vpop.f32.mrf.mxu0
    %v200 = vadd.f32 %v85, %v199
    %v201 = vpop.f32.mrf.mxu0
    %202 = vmatprep.mubr.bf16.mxu0 0
    %203 = vmatmul.mubr.bf16.gmra.mxu0 %v154
    %v204 = vpop.f32.mrf.mxu0
    %v205 = vadd.f32 %v90, %v204
    %v206 = vpop.f32.mrf.mxu0
    %v207 = vpop.f32.mrf.mxu0
    %v208 = vadd.f32 %v95, %v207
    %v209 = vpop.f32.mrf.mxu0
    %210 = vmatprep.mubr.bf16.mxu0 0
    %211 = vmatmul.mubr.bf16.gmra.mxu0 %v157
    %v212 = vpop.f32.mrf.mxu0
    %v213 = vadd.f32 %v100, %v212
    %v214 = vpop.f32.mrf.mxu0
    %v215 = vpop.f32.mrf.mxu0
    %v216 = vadd.f32 %v105, %v215
    %v217 = vpop.f32.mrf.mxu0
    %218 = vmatprep.mubr.bf16.mxu0 0
    %219 = vmatmul.mubr.bf16.gmra.mxu0 %v160
    %v220 = vpop.f32.mrf.mxu0
    %v221 = vadd.f32 %v110, %v220
    %v222 = vpop.f32.mrf.mxu0
    %v223 = vpop.f32.mrf.mxu0
    %v224 = vadd.f32 %v115, %v223
    %v225 = vpop.f32.mrf.mxu0
    %226 = vdwg.mxu0
    %v227 = vmax.f32 %v197, 0.0
    %v228 = vmax.f32 %v200, 0.0
    %v229 = vmax.f32 %v205, 0.0
    %v230 = vmax.f32 %v208, 0.0
    %v231 = vmax.f32 %v213, 0.0
    %v232 = vmax.f32 %v216, 0.0
    %v233 = vmax.f32 %v221, 0.0
    %v234 = vmax.f32 %v224, 0.0
    %v235 = vld [vmem:[%s3] sm:$0xf]
    %v236 = vld [vmem:[%s3 + $0x4] sm:$0xf]
    %v237 = vld [vmem:[%s3 + $0x8] sm:$0xf]
    %v238 = vld [vmem:[%s3 + $0xc] sm:$0xf]
    %v239 = vpack.c.bf16 %v228, %v227
    %v240 = vpack.c.bf16 %v230, %v229
    %v241 = vpack.c.bf16 %v232, %v231
    %v242 = vpack.c.bf16 %v234, %v233
    %v243 = vld [vmem:[#allocation5] sm:$0xff]
    %v244 = vld [vmem:[#allocation5 + $0x8] sm:$0xff]
    %v245 = vld [vmem:[#allocation5 + $0x10] sm:$0xff]
    %v246 = vld [vmem:[#allocation5 + $0x18] sm:$0xff]
    %248 = vset.pattern.permute.xlu0 0
    %249 = vperm.xlu0 %248, %v243
    %v250 = vpop.permute.xlu0 %249
    %253 = vset.pattern.permute.xlu0 0
    %254 = vperm.xlu0 %253, %v244
    %v255 = vpop.permute.xlu0 %254
    %258 = vset.pattern.permute.xlu0 0
    %259 = vperm.xlu0 %258, %v245
    %v260 = vpop.permute.xlu0 %259
    %263 = vset.pattern.permute.xlu0 0
    %264 = vperm.xlu0 %263, %v246
    %v265 = vpop.permute.xlu0 %264
    %v271 = vunpack.c.l.b16 %v235
    %v272 = vunpack.c.l.b16 %v236
    %v273 = vunpack.c.l.b16 %v237
    %v274 = vunpack.c.l.b16 %v238
    %v275 = vpack.c.b16 %v272, %v271
    %v276 = vpack.c.b16 %v274, %v273
    %vm277 = vcmask 523264
    %v279 = vsel %vm277, %v275, 0
    %v282 = vsel %vm277, %v276, 0
    %284 = vmatprep.subr.bf16.mxu0 0
    %285 = vmatpush1.bf16.msra.mxu0 0
    %286 = vmatprep.subr.bf16.mxu0 0
    %287 = vmatpush1.bf16.msra.mxu0 0
    %288 = vmatprep.subr.bf16.mxu0 0
    %289 = vmatpush1.bf16.msra.mxu0 0
    %290 = vmatprep.subr.bf16.mxu0 0
    %291 = vmatpush1.bf16.msra.mxu0 0
    %292 = vmatprep.subr.bf16.mxu0 0
    %293 = vmatpush1.bf16.msra.mxu0 %v242
    %294 = vmatprep.subr.bf16.mxu0 0
    %295 = vmatpush1.bf16.msra.mxu0 %v241
    %296 = vmatprep.subr.bf16.mxu0 0
    %297 = vmatpush1.bf16.msra.mxu0 %v240
    %298 = vmatprep.subr.bf16.mxu0 0
    %299 = vmatpush1.bf16.msra.mxu0 %v239
    %300 = vmatprep.subr.bf16.mxu0 0
    %301 = vmatpush2.bf16.msra.mxu0 0
    %302 = vmatprep.subr.bf16.mxu0 0
    %303 = vmatpush2.bf16.msra.mxu0 0
    %304 = vmatprep.subr.bf16.mxu0 0
    %305 = vmatpush2.bf16.msra.mxu0 0
    %306 = vmatprep.subr.bf16.mxu0 0
    %307 = vmatpush2.bf16.msra.mxu0 0
    %308 = vmatprep.subr.bf16.mxu0 0
    %309 = vmatpush2.bf16.msra.mxu0 0
    %310 = vmatprep.subr.bf16.mxu0 0
    %311 = vmatpush2.bf16.msra.mxu0 0
    %312 = vmatprep.subr.bf16.mxu0 0
    %313 = vmatpush2.bf16.msra.mxu0 0
    %314 = vmatprep.subr.bf16.mxu0 0
    %315 = vmatpush2.bf16.msra.mxu0 0
    %316 = vmatprep.mubr.bf16.mxu0 0
    %317 = vmatmul.mubr.bf16.gmra.mxu0 %v279
    %v318 = vpop.f32.mrf.mxu0
    %v319 = vadd.f32 %v250, %v318
    %v320 = vpop.f32.mrf.mxu0
    %v321 = vpop.f32.mrf.mxu0
    %v322 = vadd.f32 %v255, %v321
    %v323 = vpop.f32.mrf.mxu0
    %324 = vmatprep.mubr.bf16.mxu0 0
    %325 = vmatmul.mubr.bf16.gmra.mxu0 %v282
    %v326 = vpop.f32.mrf.mxu0
    %v327 = vadd.f32 %v260, %v326
    %v328 = vpop.f32.mrf.mxu0
    %v329 = vpop.f32.mrf.mxu0
    %v330 = vadd.f32 %v265, %v329
    %v331 = vpop.f32.mrf.mxu0
    %332 = vdwg.mxu0
    %v333 = vmax.f32 %v319, 0.0
    %v334 = vmax.f32 %v322, 0.0
    %v335 = vmax.f32 %v327, 0.0
    %v336 = vmax.f32 %v330, 0.0
    %v337 = vld [vmem:[%s5] sm:$0xff]
    %v338 = vld [vmem:[%s5 + $0x8] sm:$0xff]
    %v339 = vld [vmem:[%s5 + $0x10] sm:$0xff]
    %v340 = vld [vmem:[%s5 + $0x18] sm:$0xff]
    %342 = vset.pattern.permute.xlu0 0
    %343 = vperm.xlu0 %342, %v337
    %v344 = vpop.permute.xlu0 %343
    %347 = vset.pattern.permute.xlu0 0
    %348 = vperm.xlu0 %347, %v338
    %v349 = vpop.permute.xlu0 %348
    %352 = vset.pattern.permute.xlu0 0
    %353 = vperm.xlu0 %352, %v339
    %v354 = vpop.permute.xlu0 %353
    %357 = vset.pattern.permute.xlu0 0
    %358 = vperm.xlu0 %357, %v340
    %v359 = vpop.permute.xlu0 %358
    %v361 = vmul.f32 %v333, %v344
    %v362 = vmul.f32 %v334, %v349
    %v363 = vmul.f32 %v335, %v354
    %v364 = vmul.f32 %v336, %v359
    %v365 = vadd.f32 %v361, %v362
    %v366 = vadd.f32 %v365, %v363
    %v367 = vadd.f32 %v366, %v364
    %v368 = vrot.slane %v367, 4
    %v369 = vadd.f32 %v367, %v368
    %v370 = vrot.slane %v369, 2
    %v371 = vadd.f32 %v369, %v370
    %v372 = vrot.slane %v371, 1
    %v373 = vadd.f32 %v371, %v372
    %v374 = vld [vmem:[#allocation2] sm:$0x1]
    %376 = vset.pattern.permute.xlu0 0
    %377 = vperm.xlu0 %376, %v374
    %v378 = vpop.permute.xlu0 %377
    %v380 = vlaneseq
    %v381 = vshrl.u32 %v380, 7
    %v382 = vsub.s32 0, %v381
    %v383 = vrot.slane %v378, %v382
    %v384 = vadd.f32 %v373, %v383
    %385 = vst [vmem:[%s7] sm:$0x1] %v384
    // Predicated region
    $region38: #{_lambda_.1} parent=1 // pred_check
      _
    $region39: #{_lambda_.1} parent=1 // pred_check_branch
      %387 = sbr.rel (0) target = $region41
    $region40: #{_lambda_.1} parent=1 // pred_region
      _
    $region41: #{_lambda_.1} parent=1 // pred_fallthru
      _
    // Predicated region
    $region42: #{_lambda_.1} parent=1 // pred_check
      _
    $region43: #{_lambda_.1} parent=1 // pred_check_branch
      %389 = sbr.rel (0) target = $region45
    $region44: #{_lambda_.1} parent=1 // pred_region
      _
    $region45: #{_lambda_.1} parent=1 // pred_fallthru
      _
    %390 = vsyncpa [#allocation4], 1
    %391 = vsyncpa [#allocation6], 1

</llo_original>
